<compile_context>
chip_gen: v7x
topology: tpu7x:2x2x1
jax: 0.10.0
libtpu: 0.0.40
codegen_flags: <defaults>
</compile_context>

<pallas_src>
import functools

import jax
import jax.numpy as jnp
from jax.experimental import pallas as pl
from jax.experimental.pallas import tpu as pltpu


_FILL_PLUS_ONE = 13.0  # torch.full(..., 12.0) followed by the final `+ 1`


def _fused_cat_slice_add_kernel(*refs, nf):
    """out = concat([x1 + 1, x2 + 1, full(13.0)], channel axis), one bulk store.

    refs = (*input_refs, out_ref).  Each input block is (nb, n_i, H*W) and the
    output block is (nb, c_out, H*W); the lane axis is the flattened H*W.
    `nf` (number of constant fill channels) is a static Python int.
    """
    o_ref = refs[-1]
    in_refs = refs[:-1]
    nb, _, hw = o_ref.shape

    parts = [r[...].astype(o_ref.dtype) + 1.0 for r in in_refs]
    if nf > 0:
        parts.append(jnp.full((nb, nf, hw), _FILL_PLUS_ONE, dtype=o_ref.dtype))

    out = parts[0] if len(parts) == 1 else jnp.concatenate(parts, axis=1)
    o_ref[...] = out


def model_forward(x1, x2, shape=(2, 3, 4, 5)):
    """Replicates Model.forward semantics for NCHW inputs."""
    N, C1, H, W = x1.shape
    N2, C2, H2, W2 = x2.shape
    assert (N, H, W) == (N2, H2, W2), "cat along dim=1 requires matching N,H,W"

    c_total = C1 + C2
    c_req = shape[3]  # slice length along dim 1 (self.shape[3] == 5)

    # Static branch from the PyTorch module (depends only on shapes).
    if c_req != c_total:
        avail = 2 * c_total                     # cat([v1, full(v1.shape, 12.0)], dim=1)
        out_dtype = jnp.result_type(x1.dtype, x2.dtype, jnp.float32)
    else:
        avail = c_total
        out_dtype = jnp.result_type(x1.dtype, x2.dtype)
    c_out = min(c_req, avail)                   # torch slicing clamps to available size

    n1 = min(C1, c_out)
    n2 = min(C2, max(c_out - n1, 0))
    nf = c_out - n1 - n2                        # constant 13.0 channels (may be 0)

    HW = H * W

    # Hand the kernel only the channels it reads, flattened lane-dense (last axis H*W),
    # so the HBM DMAs are contiguous and every store is an unmasked bulk store.
    inputs = []
    if n1 > 0:
        inputs.append(x1[:, :n1].reshape(N, n1, HW))
    if n2 > 0:
        inputs.append(x2[:, :n2].reshape(N, n2, HW))

    kernel = functools.partial(_fused_cat_slice_add_kernel, nf=nf)
    out_shape = jax.ShapeDtypeStruct((N, c_out, HW), out_dtype)

    per_batch_bytes = sum(a.dtype.itemsize * a.shape[1] * HW for a in inputs)
    per_batch_bytes += jnp.dtype(out_dtype).itemsize * c_out * HW

    if N > 1 and per_batch_bytes >= (1 << 20):
        # Large per-batch slabs: keep a batch grid axis so BlockSpec double-buffers
        # the HBM traffic and v7x's 2 TensorCores can split the batch ("parallel").
        # TODO(synk): tile the H*W axis as well if a single batch slab ever approaches
        # the v7x 64 MiB VMEM budget.
        out = pl.pallas_call(
            kernel,
            out_shape=out_shape,
            grid=(N,),
            in_specs=[
                pl.BlockSpec((1, a.shape[1], HW), lambda i: (i, 0, 0))
                for a in inputs
            ],
            out_specs=pl.BlockSpec((1, c_out, HW), lambda i: (i, 0, 0)),
            compiler_params=pltpu.CompilerParams(
                dimension_semantics=("parallel",)),
        )(*inputs)
    else:
        # Tiny/medium problem: one invocation, whole arrays resident in VMEM.
        # No per-grid-step overhead; one bulk copy in, one bulk copy out.
        out = pl.pallas_call(
            kernel,
            out_shape=out_shape,
            in_specs=[pl.BlockSpec(memory_space=pltpu.MemorySpace.VMEM)
                      for _ in inputs],
            out_specs=pl.BlockSpec(memory_space=pltpu.MemorySpace.VMEM),
        )(*inputs)

    return out.reshape(N, c_out, H, W)


def _reference_forward(x1, x2, shape=(2, 3, 4, 5)):
    """Plain-JAX reference mirroring the PyTorch code line-by-line."""
    v1 = jnp.concatenate([x1, x2], axis=1)
    v2 = v1[:, 0:9223372036854775807]
    if shape[3] != v2.shape[1]:
        x3 = jnp.full(v1.shape, 12.0, dtype=jnp.float32)
        v3 = jnp.concatenate([v1, x3], axis=1)
        v4 = v3[:, 0:shape[3]]
    else:
        v4 = v2[:, 0:shape[3]]
    return v4 + 1


if __name__ == "__main__":
    key = jax.random.PRNGKey(0)
    k1, k2, k3, k4, k5, k6 = jax.random.split(key, 6)

    # Case 1: channels 3 + 3 = 6 != 5 -> fill branch, slice covers x1 + part of x2.
    x1_a = jax.random.normal(k1, (2, 3, 4, 4), dtype=jnp.float32)
    x2_a = jax.random.normal(k2, (2, 3, 4, 4), dtype=jnp.float32)
    out_a = model_forward(x1_a, x2_a)
    jax.block_until_ready(out_a)
    ref_a = _reference_forward(x1_a, x2_a)
    assert out_a.shape == ref_a.shape == (2, 5, 4, 4)
    assert jnp.allclose(out_a, ref_a, atol=1e-6), "case 1 mismatch"

    # Case 2: channels 2 + 2 = 4 != 5 -> fill branch contributes one 13.0 channel.
    x1_b = jax.random.normal(k3, (2, 2, 4, 4), dtype=jnp.float32)
    x2_b = jax.random.normal(k4, (2, 2, 4, 4), dtype=jnp.float32)
    out_b = model_forward(x1_b, x2_b)
    jax.block_until_ready(out_b)
    ref_b = _reference_forward(x1_b, x2_b)
    assert out_b.shape == ref_b.shape == (2, 5, 4, 4)
    assert jnp.allclose(out_b, ref_b, atol=1e-6), "case 2 mismatch"

    # Case 3: larger spatial extent (3 + 2 = 5 channels -> no-fill branch), exercises
    # the batched "parallel" grid path with lane-dense H*W = 98304 blocks.
    x1_c = jax.random.normal(k5, (4, 3, 256, 384), dtype=jnp.float32)
    x2_c = jax.random.normal(k6, (4, 2, 256, 384), dtype=jnp.float32)
    out_c = model_forward(x1_c, x2_c)
    jax.block_until_ready(out_c)
    ref_c = _reference_forward(x1_c, x2_c)
    assert out_c.shape == ref_c.shape == (4, 5, 256, 384)
    assert jnp.allclose(out_c, ref_c, atol=1e-6), "case 3 mismatch"

    print("KERNEL_OK")
</pallas_src>

<mosaic_0001>
module attributes {stable_mosaic.version = 11 : i64} {
  func.func @_fused_cat_slice_add_kernel(%arg0: memref<2x3x16xf32, #tpu.memory_space<vmem>>, %arg1: memref<2x2x16xf32, #tpu.memory_space<vmem>>, %arg2: memref<2x5x16xf32, #tpu.memory_space<vmem>>) attributes {dimension_semantics = [], scalar_prefetch = 0 : i64, scratch_operands = 0 : i64, tpu.core_type = #tpu.core_type<tc>} {
    %c0 = arith.constant 0 : index
    %c0_0 = arith.constant 0 : index
    %c0_1 = arith.constant 0 : index
    %0 = vector.load %arg0[%c0, %c0_0, %c0_1] : memref<2x3x16xf32, #tpu.memory_space<vmem>>, vector<2x3x16xf32>
    %cst = arith.constant 1.000000e+00 : f32
    %1 = vector.broadcast %cst : f32 to vector<2x3x16xf32>
    %2 = arith.addf %0, %1 : vector<2x3x16xf32>
    %c0_2 = arith.constant 0 : index
    %c0_3 = arith.constant 0 : index
    %c0_4 = arith.constant 0 : index
    %3 = vector.load %arg1[%c0_2, %c0_3, %c0_4] : memref<2x2x16xf32, #tpu.memory_space<vmem>>, vector<2x2x16xf32>
    %cst_5 = arith.constant 1.000000e+00 : f32
    %4 = vector.broadcast %cst_5 : f32 to vector<2x2x16xf32>
    %5 = arith.addf %3, %4 : vector<2x2x16xf32>
    %6 = tpu.concatenate %2, %5 in 1 : vector<2x3x16xf32>, vector<2x2x16xf32> -> vector<2x5x16xf32>
    %c0_6 = arith.constant 0 : index
    %c0_7 = arith.constant 0 : index
    %c0_8 = arith.constant 0 : index
    %7 = vector.load %arg2[%c0_6, %c0_7, %c0_8] : memref<2x5x16xf32, #tpu.memory_space<vmem>>, vector<2x5x16xf32>
    tpu.vector_store %arg2[%c0_6, %c0_7, %c0_8], %6 {strides = array<i32>} : memref<2x5x16xf32, #tpu.memory_space<vmem>>, vector<2x5x16xf32>,
    return
  }
}

</mosaic_0001>

<llo_original>
// kernel: tpu_custom_call.1
$region0: #{tpu_custom_call.1}
  #allocation0 [shape = 'u32[]', space=smem, size = 0x4, offset = 0x4, fixed_abs, tag = 'smem constant byte address 0x4 - core index']
  #allocation1 [shape = 'u32[144,128]{1,0:T(1,128)}', space=vmem, size = 0x12000, scoped, tag = 'internal scratch']
  %s0 = inlined_call_operand.vmem [shape: f32[2,3,16], index: 0, kind: input, shape index: {}]
  %s1 = inlined_call_operand.vmem [shape: f32[2,2,16], index: 1, kind: input, shape index: {}]
  %s2 = inlined_call_operand.vmem [shape: f32[2,5,16], index: 2, kind: output, shape index: {}]
  %s3 = sld [smem:[#allocation0]]
  $region18: #{tpu_custom_call.1} parent=0
    _
  %s5 = ssub.s32 1, %s3
  %s6 = scalar_select 0, %s5, %s3
  // Predicated region
  $region2: #{tpu_custom_call.1} parent=0 // pred_check
    _
  $region3: #{tpu_custom_call.1} parent=0 // pred_check_branch
    %8 = sbr.rel (0) target = $region5
  $region4: #{tpu_custom_call.1} parent=0 // pred_region
    _
  $region5: #{tpu_custom_call.1} parent=0 // pred_fallthru
    _
  // Predicated region
  $region6: #{tpu_custom_call.1} parent=0 // pred_check
    _
  $region7: #{tpu_custom_call.1} parent=0 // pred_check_branch
    %10 = sbr.rel (0) target = $region9
  $region8: #{tpu_custom_call.1} parent=0 // pred_region
    _
  $region9: #{tpu_custom_call.1} parent=0 // pred_fallthru
    _
  %v11 = vld [vmem:[%s0] sm:$0x7]
  %v12 = vld [vmem:[%s0 + $0x4] sm:$0x7]
  %v13 = vadd.f32 %v11, 1.0
  %v14 = vadd.f32 %v12, 1.0
  %v15 = vld [vmem:[%s1] sm:$0x3]
  %v16 = vld [vmem:[%s1 + $0x2] sm:$0x3]
  %v17 = vadd.f32 %v15, 1.0
  %v18 = vadd.f32 %v16, 1.0
  %v21 = vrot.slane %v17, 5
  %v22 = vrot.slane %v18, 5
  %vm25 = vcmask 1042432
  %v26 = vsel %vm25, %v13, %v21
  %v27 = vsel %vm25, %v14, %v22
  %vm28 = vcmask 126976
  %29 = vst.msk [vmem:[%s2] sm:$0x1f] %vm28, %v26
  %30 = vst.msk [vmem:[%s2 + $0x8] sm:$0x1f] %vm28, %v27
  // Predicated region
  $region10: #{tpu_custom_call.1} parent=0 // pred_check
    _
  $region11: #{tpu_custom_call.1} parent=0 // pred_check_branch
    %32 = sbr.rel (0) target = $region13
  $region12: #{tpu_custom_call.1} parent=0 // pred_region
    _
  $region13: #{tpu_custom_call.1} parent=0 // pred_fallthru
    _
  // Predicated region
  $region14: #{tpu_custom_call.1} parent=0 // pred_check
    _
  $region15: #{tpu_custom_call.1} parent=0 // pred_check_branch
    %34 = sbr.rel (0) target = $region17
  $region16: #{tpu_custom_call.1} parent=0 // pred_region
    _
  $region17: #{tpu_custom_call.1} parent=0 // pred_fallthru
    _

</llo_original>
